<compile_context>
chip_gen: v7x
topology: tpu7x:2x2x1
jax: 0.10.0
libtpu: 0.0.40
codegen_flags: <defaults>
</compile_context>

<pallas_src>
import jax
import jax.numpy as jnp
from jax.experimental import pallas as pl
from jax.experimental.pallas import tpu as pltpu


def _round_up(n, m):
    return ((n + m - 1) // m) * m


def _make_policy_kernel(compute_dtype, with_logp):
    """Build a kernel closure; everything inside is (features, TB), batch on lanes."""

    def mlp_logits(x, w1, b1, w2, b2, w3, b3):
        # x, w1, w2, w3 are compute_dtype; biases f32; accumulate in f32 on MXU.
        h = jnp.tanh((jnp.dot(w1, x, preferred_element_type=jnp.float32)
                      + b1).astype(compute_dtype))                 # (H, TB)
        h = jnp.tanh((jnp.dot(w2, h, preferred_element_type=jnp.float32)
                      + b2).astype(compute_dtype))                 # (H, TB)
        return (jnp.dot(w3, h, preferred_element_type=jnp.float32)
                + b3)                                              # (A, TB) f32

    if with_logp:
        def kernel(obs_ref, w1_ref, b1_ref, w2_ref, b2_ref, w3_ref, b3_ref,
                   act_ref, logits_ref, logp_ref):
            logits = mlp_logits(obs_ref[...], w1_ref[...], b1_ref[...],
                                w2_ref[...], b2_ref[...], w3_ref[...], b3_ref[...])
            logits_ref[...] = logits

            # Categorical(logits).log_prob(act) = logits[act] - logsumexp(logits)
            m = jnp.max(logits, axis=0, keepdims=True)             # (1, TB)
            lse = m + jnp.log(jnp.sum(jnp.exp(logits - m), axis=0, keepdims=True))

            n_act = logits.shape[0]
            a = jnp.clip(act_ref[...], 0, n_act - 1)               # clamp == take_along_axis
            row = jax.lax.broadcasted_iota(jnp.int32, logits.shape, 0)
            picked = jnp.sum(jnp.where(row == a, logits, 0.0),
                             axis=0, keepdims=True)                # (1, TB)
            logp_ref[...] = picked - lse
    else:
        def kernel(obs_ref, w1_ref, b1_ref, w2_ref, b2_ref, w3_ref, b3_ref,
                   logits_ref):
            logits_ref[...] = mlp_logits(obs_ref[...], w1_ref[...], b1_ref[...],
                                         w2_ref[...], b2_ref[...],
                                         w3_ref[...], b3_ref[...])
    return kernel


def mlp_categorical_policy_forward_t(obs_t, params, act=None, *,
                                     batch_tile=2048,
                                     compute_dtype=jnp.float32):
    """Transposed (zero-copy) Pallas forward of MLPCategoricalPolicy.

    obs_t:  (obs_dim, B) observations (batch on the trailing axis).
    params: [(W1, b1), (W2, b2), (W3, b3)], W:(out, in), b:(out, 1) (nn.Linear layout).
    act:    optional (B,) integer actions in [0, n_act) (clamped like take_along_axis).

    Returns (logits_t, logp_a): logits_t is (n_act, B) f32 and fully defines
    Categorical(logits=logits_t.T); logp_a is (B,) f32 or None when act is None.
    """
    (w1, b1), (w2, b2), (w3, b3) = params
    obs_dim, B = obs_t.shape
    n_act = w3.shape[0]

    # Lane-dense stores require TB to be a multiple of 128.
    batch_tile = max(128, _round_up(int(batch_tile), 128))

    # Adaptive tiling: cap per-block padding; >=2 blocks once B >= 256 so the
    # "parallel" batch axis can shard across v7x's two TensorCores.
    n_blocks = pl.cdiv(B, batch_tile)
    if B >= 256:
        n_blocks = max(n_blocks, 2)
    TB = _round_up(pl.cdiv(B, n_blocks), 128)
    B_pad = n_blocks * TB

    # Input prep: cast (bf16 mode halves the dominant obs HBM read) and pad the
    # batch tail only when B is not already a multiple of TB.
    obs_t = jnp.asarray(obs_t)
    if obs_t.dtype != compute_dtype:
        obs_t = obs_t.astype(compute_dtype)
    if B_pad != B:
        obs_t = jnp.pad(obs_t, ((0, 0), (0, B_pad - B)))

    if compute_dtype != jnp.float32:
        w1c, w2c, w3c = (w.astype(compute_dtype) for w in (w1, w2, w3))
    else:
        w1c, w2c, w3c = w1, w2, w3
    # Biases stay f32 (added to the f32 MXU accumulation).

    def resident(a):
        # Constant index_map: stays VMEM-resident across all grid steps.
        return pl.BlockSpec(a.shape, lambda i: (0, 0))

    obs_spec = pl.BlockSpec((obs_dim, TB), lambda i: (0, i))
    common_in = [obs_spec,
                 resident(w1c), resident(b1),
                 resident(w2c), resident(b2),
                 resident(w3c), resident(b3)]
    logits_spec = pl.BlockSpec((n_act, TB), lambda i: (0, i))

    cparams = pltpu.CompilerParams(
        dimension_semantics=("parallel",),          # megacore on v7x
        vmem_limit_bytes=32 * 1024 * 1024,          # usage is <2 MiB at TB=2048
    )

    if act is not None:
        act_arr = jnp.asarray(act).astype(jnp.int32).reshape(1, B)
        if B_pad != B:
            act_arr = jnp.pad(act_arr, ((0, 0), (0, B_pad - B)))

        logits_t, logp_t = pl.pallas_call(
            _make_policy_kernel(compute_dtype, with_logp=True),
            out_shape=(jax.ShapeDtypeStruct((n_act, B_pad), jnp.float32),
                       jax.ShapeDtypeStruct((1, B_pad), jnp.float32)),
            grid=(n_blocks,),
            in_specs=common_in + [pl.BlockSpec((1, TB), lambda i: (0, i))],
            out_specs=(logits_spec, pl.BlockSpec((1, TB), lambda i: (0, i))),
            compiler_params=cparams,
        )(obs_t, w1c, b1, w2c, b2, w3c, b3, act_arr)
        logp_a = logp_t[0, :B]
    else:
        # Static no-act variant: no logsumexp, no act DMA, no logp writeback.
        logits_t = pl.pallas_call(
            _make_policy_kernel(compute_dtype, with_logp=False),
            out_shape=jax.ShapeDtypeStruct((n_act, B_pad), jnp.float32),
            grid=(n_blocks,),
            in_specs=common_in,
            out_specs=logits_spec,
            compiler_params=cparams,
        )(obs_t, w1c, b1, w2c, b2, w3c, b3)
        logp_a = None

    if B_pad != B:
        logits_t = logits_t[:, :B]
    return logits_t, logp_a


def mlp_categorical_policy_forward(obs, params, act=None, **kwargs):
    """PyTorch-layout convenience wrapper: obs (B, obs_dim) -> logits (B, n_act).

    NOTE: this path pays a one-shot XLA transpose of obs and of the logits.
    Hot paths should call mlp_categorical_policy_forward_t with pre-transposed
    observations to avoid the extra HBM round-trips.
    """
    logits_t, logp_a = mlp_categorical_policy_forward_t(
        jnp.asarray(obs, jnp.float32).T, params, act, **kwargs)
    return logits_t.T, logp_a


def init_params(key, sizes):
    """Deterministic init in nn.Linear layout: W (out, in), b (out, 1)."""
    params = []
    for i in range(len(sizes) - 1):
        fan_in, fan_out = sizes[i], sizes[i + 1]
        key, kw, kb = jax.random.split(key, 3)
        bound = 1.0 / jnp.sqrt(fan_in)
        w = jax.random.uniform(kw, (fan_out, fan_in), jnp.float32, -bound, bound)
        b = jax.random.uniform(kb, (fan_out, 1), jnp.float32, -bound, bound)
        params.append((w, b))
    return params


def _reference_forward(obs, params, act):
    (w1, b1), (w2, b2), (w3, b3) = params
    h = jnp.tanh(obs @ w1.T + b1[:, 0])
    h = jnp.tanh(h @ w2.T + b2[:, 0])
    logits = h @ w3.T + b3[:, 0]
    logp_all = jax.nn.log_softmax(logits, axis=-1)
    logp_a = jnp.take_along_axis(
        logp_all, act[:, None].astype(jnp.int32), axis=-1)[:, 0]
    return logits, logp_a


if __name__ == "__main__":
    # sizes = [obs_dim, hidden, hidden, n_actions]
    sizes = [16, 32, 32, 8]

    key = jax.random.PRNGKey(0)
    key, k_param = jax.random.split(key)
    params = init_params(k_param, sizes)

    # --- small batch (single tile), PyTorch-layout API, f32 ---
    batch = 4
    key, k_obs, k_act = jax.random.split(key, 3)
    obs = jax.random.normal(k_obs, (batch, sizes[0]), jnp.float32)
    act = jax.random.randint(k_act, (batch,), 0, sizes[-1], jnp.int32)

    logits, logp_a = mlp_categorical_policy_forward(obs, params, act)
    jax.block_until_ready((logits, logp_a))
    ref_logits, ref_logp = _reference_forward(obs, params, act)
    assert jnp.allclose(logits, ref_logits, atol=1e-5, rtol=1e-5)
    assert jnp.allclose(logp_a, ref_logp, atol=1e-5, rtol=1e-5)

    # act=None path (forward(obs) -> (pi, None)); exercises the no-logp kernel.
    logits_only, none_logp = mlp_categorical_policy_forward(obs, params, None)
    jax.block_until_ready(logits_only)
    assert none_logp is None
    assert jnp.allclose(logits_only, ref_logits, atol=1e-5, rtol=1e-5)

    # --- multi-block batch through the transposed (zero-copy) API, f32 ---
    batch2 = 300  # -> n_blocks=2 (v7x megacore), TB=256, padded tail
    key, k_obs2, k_act2 = jax.random.split(key, 3)
    obs2 = jax.random.normal(k_obs2, (batch2, sizes[0]), jnp.float32)
    act2 = jax.random.randint(k_act2, (batch2,), 0, sizes[-1], jnp.int32)
    logits2_t, logp2 = mlp_categorical_policy_forward_t(obs2.T, params, act2)
    jax.block_until_ready((logits2_t, logp2))
    ref_logits2, ref_logp2 = _reference_forward(obs2, params, act2)
    assert jnp.allclose(logits2_t.T, ref_logits2, atol=1e-5, rtol=1e-5)
    assert jnp.allclose(logp2, ref_logp2, atol=1e-5, rtol=1e-5)

    # --- optional bf16 compute path (v6e/v7x fast path); looser tolerance ---
    logits_bf, logp_bf = mlp_categorical_policy_forward(
        obs, params, act, compute_dtype=jnp.bfloat16)
    jax.block_until_ready((logits_bf, logp_bf))
    assert jnp.allclose(logits_bf, ref_logits, atol=1.5e-1, rtol=5e-2)
    assert jnp.allclose(logp_bf, ref_logp, atol=1.5e-1, rtol=5e-2)

    print("KERNEL_OK")
</pallas_src>

<mosaic_0001>
module attributes {stable_mosaic.version = 11 : i64} {
  func.func @kernel(%arg0: i32, %arg1: memref<16x128xf32, #tpu.memory_space<vmem>>, %arg2: memref<32x16xf32, #tpu.memory_space<vmem>>, %arg3: memref<32x1xf32, #tpu.memory_space<vmem>>, %arg4: memref<32x32xf32, #tpu.memory_space<vmem>>, %arg5: memref<32x1xf32, #tpu.memory_space<vmem>>, %arg6: memref<8x32xf32, #tpu.memory_space<vmem>>, %arg7: memref<8x1xf32, #tpu.memory_space<vmem>>, %arg8: memref<1x128xi32, #tpu.memory_space<vmem>>, %arg9: memref<8x128xf32, #tpu.memory_space<vmem>>, %arg10: memref<1x128xf32, #tpu.memory_space<vmem>>) attributes {dimension_semantics = [#tpu.dimension_semantics<parallel>], iteration_bounds = array<i64: 1>, scalar_prefetch = 0 : i64, scratch_operands = 0 : i64, tpu.core_type = #tpu.core_type<tc>, window_params = [{transform_indices = @transform_0, window_bounds = array<i64: 16, 128>}, {pipeline_mode = #tpu.pipeline_mode<synchronous>, transform_indices = @transform_1, window_bounds = array<i64: 32, 16>}, {pipeline_mode = #tpu.pipeline_mode<synchronous>, transform_indices = @transform_2, window_bounds = array<i64: 32, 1>}, {pipeline_mode = #tpu.pipeline_mode<synchronous>, transform_indices = @transform_3, window_bounds = array<i64: 32, 32>}, {pipeline_mode = #tpu.pipeline_mode<synchronous>, transform_indices = @transform_4, window_bounds = array<i64: 32, 1>}, {pipeline_mode = #tpu.pipeline_mode<synchronous>, transform_indices = @transform_5, window_bounds = array<i64: 8, 32>}, {pipeline_mode = #tpu.pipeline_mode<synchronous>, transform_indices = @transform_6, window_bounds = array<i64: 8, 1>}, {transform_indices = @transform_7, window_bounds = array<i64: 1, 128>}, {transform_indices = @transform_8, window_bounds = array<i64: 8, 128>}, {transform_indices = @transform_9, window_bounds = array<i64: 1, 128>}]} {
    %c0 = arith.constant 0 : index
    %c0_0 = arith.constant 0 : index
    %0 = vector.load %arg1[%c0, %c0_0] : memref<16x128xf32, #tpu.memory_space<vmem>>, vector<16x128xf32>
    %c0_1 = arith.constant 0 : index
    %c0_2 = arith.constant 0 : index
    %1 = vector.load %arg2[%c0_1, %c0_2] : memref<32x16xf32, #tpu.memory_space<vmem>>, vector<32x16xf32>
    %c0_3 = arith.constant 0 : index
    %c0_4 = arith.constant 0 : index
    %2 = vector.load %arg3[%c0_3, %c0_4] : memref<32x1xf32, #tpu.memory_space<vmem>>, vector<32x1xf32>
    %c0_5 = arith.constant 0 : index
    %c0_6 = arith.constant 0 : index
    %3 = vector.load %arg4[%c0_5, %c0_6] : memref<32x32xf32, #tpu.memory_space<vmem>>, vector<32x32xf32>
    %c0_7 = arith.constant 0 : index
    %c0_8 = arith.constant 0 : index
    %4 = vector.load %arg5[%c0_7, %c0_8] : memref<32x1xf32, #tpu.memory_space<vmem>>, vector<32x1xf32>
    %c0_9 = arith.constant 0 : index
    %c0_10 = arith.constant 0 : index
    %5 = vector.load %arg6[%c0_9, %c0_10] : memref<8x32xf32, #tpu.memory_space<vmem>>, vector<8x32xf32>
    %c0_11 = arith.constant 0 : index
    %c0_12 = arith.constant 0 : index
    %6 = vector.load %arg7[%c0_11, %c0_12] : memref<8x1xf32, #tpu.memory_space<vmem>>, vector<8x1xf32>
    %cst = arith.constant dense<0.000000e+00> : vector<32x128xf32>
    %7 = tpu.matmul %1, %0, %cst {dimension_numbers = #tpu.dot_dimension_numbers<[1], [0], [0], [1], [0, 0, 1, 1], [], []>} : vector<32x16xf32>, vector<16x128xf32>, vector<32x128xf32> -> vector<32x128xf32>
    %8 = vector.broadcast %2 : vector<32x1xf32> to vector<32x128xf32>
    %9 = arith.addf %7, %8 : vector<32x128xf32>
    %10 = math.tanh %9 : vector<32x128xf32>
    %cst_13 = arith.constant dense<0.000000e+00> : vector<32x128xf32>
    %11 = tpu.matmul %3, %10, %cst_13 {dimension_numbers = #tpu.dot_dimension_numbers<[1], [0], [0], [1], [0, 0, 1, 1], [], []>} : vector<32x32xf32>, vector<32x128xf32>, vector<32x128xf32> -> vector<32x128xf32>
    %12 = vector.broadcast %4 : vector<32x1xf32> to vector<32x128xf32>
    %13 = arith.addf %11, %12 : vector<32x128xf32>
    %14 = math.tanh %13 : vector<32x128xf32>
    %cst_14 = arith.constant dense<0.000000e+00> : vector<8x128xf32>
    %15 = tpu.matmul %5, %14, %cst_14 {dimension_numbers = #tpu.dot_dimension_numbers<[1], [0], [0], [1], [0, 0, 1, 1], [], []>} : vector<8x32xf32>, vector<32x128xf32>, vector<8x128xf32> -> vector<8x128xf32>
    %16 = vector.broadcast %6 : vector<8x1xf32> to vector<8x128xf32>
    %17 = arith.addf %15, %16 : vector<8x128xf32>
    %c0_15 = arith.constant 0 : index
    %c0_16 = arith.constant 0 : index
    %18 = vector.load %arg9[%c0_15, %c0_16] : memref<8x128xf32, #tpu.memory_space<vmem>>, vector<8x128xf32>
    tpu.vector_store %arg9[%c0_15, %c0_16], %17 {strides = array<i32>} : memref<8x128xf32, #tpu.memory_space<vmem>>, vector<8x128xf32>,
    %cst_17 = arith.constant dense<0xFF800000> : vector<128xf32>
    %19 = vector.multi_reduction <maximumf>, %17, %cst_17 [0] : vector<8x128xf32> to vector<128xf32>
    %20 = vector.shape_cast %19 : vector<128xf32> to vector<1x128xf32>
    %21 = vector.broadcast %20 : vector<1x128xf32> to vector<8x128xf32>
    %22 = arith.subf %17, %21 : vector<8x128xf32>
    %23 = math.exp %22 : vector<8x128xf32>
    %cst_18 = arith.constant dense<0.000000e+00> : vector<128xf32>
    %24 = vector.multi_reduction <add>, %23, %cst_18 [0] : vector<8x128xf32> to vector<128xf32>
    %25 = vector.shape_cast %24 : vector<128xf32> to vector<1x128xf32>
    %26 = math.log %25 : vector<1x128xf32>
    %27 = arith.addf %20, %26 : vector<1x128xf32>
    %c0_19 = arith.constant 0 : index
    %c0_20 = arith.constant 0 : index
    %28 = vector.load %arg8[%c0_19, %c0_20] : memref<1x128xi32, #tpu.memory_space<vmem>>, vector<1x128xi32>
    %c0_i32 = arith.constant 0 : i32
    %c7_i32 = arith.constant 7 : i32
    %29 = vector.broadcast %c0_i32 : i32 to vector<1x128xi32>
    %30 = arith.maxsi %29, %28 : vector<1x128xi32>
    %31 = vector.broadcast %c7_i32 : i32 to vector<1x128xi32>
    %32 = arith.minsi %31, %30 : vector<1x128xi32>
    %33 = tpu.iota {dimensions = array<i32: 0>} : vector<8x128xi32>
    %34 = vector.broadcast %32 : vector<1x128xi32> to vector<8x128xi32>
    %35 = arith.cmpi eq, %33, %34 : vector<8x128xi32>
    %cst_21 = arith.constant 0.000000e+00 : f32
    %36 = vector.broadcast %cst_21 : f32 to vector<8x128xf32>
    %37 = arith.select %35, %17, %36 : vector<8x128xi1>, vector<8x128xf32>
    %cst_22 = arith.constant dense<0.000000e+00> : vector<128xf32>
    %38 = vector.multi_reduction <add>, %37, %cst_22 [0] : vector<8x128xf32> to vector<128xf32>
    %39 = vector.shape_cast %38 : vector<128xf32> to vector<1x128xf32>
    %40 = arith.subf %39, %27 : vector<1x128xf32>
    %c0_23 = arith.constant 0 : index
    %c0_24 = arith.constant 0 : index
    %41 = vector.load %arg10[%c0_23, %c0_24] : memref<1x128xf32, #tpu.memory_space<vmem>>, vector<1x128xf32>
    tpu.vector_store %arg10[%c0_23, %c0_24], %40 {strides = array<i32>} : memref<1x128xf32, #tpu.memory_space<vmem>>, vector<1x128xf32>,
    return
  }
  func.func @transform_0(%arg0: i32) -> (i32, i32) {
    %c0_i32 = arith.constant 0 : i32
    %c0_i32_0 = arith.constant 0 : i32
    return %c0_i32, %arg0 : i32, i32
  }
  func.func @transform_1(%arg0: i32) -> (i32, i32) {
    %c0_i32 = arith.constant 0 : i32
    %c0_i32_0 = arith.constant 0 : i32
    %c0_i32_1 = arith.constant 0 : i32
    return %c0_i32, %c0_i32_0 : i32, i32
  }
  func.func @transform_2(%arg0: i32) -> (i32, i32) {
    %c0_i32 = arith.constant 0 : i32
    %c0_i32_0 = arith.constant 0 : i32
    %c0_i32_1 = arith.constant 0 : i32
    return %c0_i32, %c0_i32_0 : i32, i32
  }
  func.func @transform_3(%arg0: i32) -> (i32, i32) {
    %c0_i32 = arith.constant 0 : i32
    %c0_i32_0 = arith.constant 0 : i32
    %c0_i32_1 = arith.constant 0 : i32
    return %c0_i32, %c0_i32_0 : i32, i32
  }
  func.func @transform_4(%arg0: i32) -> (i32, i32) {
    %c0_i32 = arith.constant 0 : i32
    %c0_i32_0 = arith.constant 0 : i32
    %c0_i32_1 = arith.constant 0 : i32
    return %c0_i32, %c0_i32_0 : i32, i32
  }
  func.func @transform_5(%arg0: i32) -> (i32, i32) {
    %c0_i32 = arith.constant 0 : i32
    %c0_i32_0 = arith.constant 0 : i32
    %c0_i32_1 = arith.constant 0 : i32
    return %c0_i32, %c0_i32_0 : i32, i32
  }
  func.func @transform_6(%arg0: i32) -> (i32, i32) {
    %c0_i32 = arith.constant 0 : i32
    %c0_i32_0 = arith.constant 0 : i32
    %c0_i32_1 = arith.constant 0 : i32
    return %c0_i32, %c0_i32_0 : i32, i32
  }
  func.func @transform_7(%arg0: i32) -> (i32, i32) {
    %c0_i32 = arith.constant 0 : i32
    %c0_i32_0 = arith.constant 0 : i32
    return %c0_i32, %arg0 : i32, i32
  }
  func.func @transform_8(%arg0: i32) -> (i32, i32) {
    %c0_i32 = arith.constant 0 : i32
    %c0_i32_0 = arith.constant 0 : i32
    return %c0_i32, %arg0 : i32, i32
  }
  func.func @transform_9(%arg0: i32) -> (i32, i32) {
    %c0_i32 = arith.constant 0 : i32
    %c0_i32_0 = arith.constant 0 : i32
    return %c0_i32, %arg0 : i32, i32
  }
}

</mosaic_0001>

<llo_original>
// kernel: tpu_custom_call.1
$region0: #{tpu_custom_call.1}
  #allocation0 [shape = 'u32[]', space=smem, size = 0x4, offset = 0x4, fixed_abs, tag = 'smem constant byte address 0x4 - core index']
  #allocation1 [shape = 'u32[144,128]{1,0:T(1,128)}', space=vmem, size = 0x12000, scoped, tag = 'internal scratch']
  %s0 = inlined_call_operand.vmem [shape: f32[16,128], index: 0, kind: input, shape index: {}]
  %s1 = inlined_call_operand.vmem [shape: f32[32,16], index: 1, kind: input, shape index: {}]
  %s2 = inlined_call_operand.vmem [shape: f32[32,1], index: 2, kind: input, shape index: {}]
  %s3 = inlined_call_operand.vmem [shape: f32[32,32], index: 3, kind: input, shape index: {}]
  %s4 = inlined_call_operand.vmem [shape: f32[32,1], index: 4, kind: input, shape index: {}]
  %s5 = inlined_call_operand.vmem [shape: f32[8,32], index: 5, kind: input, shape index: {}]
  %s6 = inlined_call_operand.vmem [shape: f32[8,1], index: 6, kind: input, shape index: {}]
  %s7 = inlined_call_operand.vmem [shape: s32[1,128], index: 7, kind: input, shape index: {}]
  %s8 = inlined_call_operand.hbm [shape: f32[8,128], index: 8, kind: output, shape index: {0}]
  %s9 = inlined_call_operand.hbm [shape: f32[1,128], index: 9, kind: output, shape index: {1}]
  %10 = xla_tuple %s8, %s9
  %s11 = sld [smem:[#allocation0]]
  $region50: #{tpu_custom_call.1} parent=0
    _
  %s13 = ssub.s32 1, %s11
  %s14 = scalar_select 0, %s13, %s11
  $region1: #{tpu_custom_call.1} parent=0
    #allocation2 [shape = 'u8[4096]{0}', space=vmem, size = 0x1000, scoped, tag = 'output window, operand 0, single buffered']
    #allocation3 [shape = 's32[1]{0}', space=sflag, size = 0x4, scoped, tag = 'scoped memory for tpu_custom_call.1']
    #allocation4 [shape = 'u8[512]{0}', space=vmem, size = 0x400, scoped, tag = 'output window, operand 1, single buffered']
    #allocation5 [shape = 's32[1]{0}', space=sflag, size = 0x4, scoped, tag = 'scoped memory for tpu_custom_call.1']
    %15 = vsyncpa [#allocation3], 0
    %16 = vsyncpa [#allocation5], 0
    // Predicated region
    $region2: #{tpu_custom_call.1} parent=1 // pred_check
      _
    $region3: #{tpu_custom_call.1} parent=1 // pred_check_branch
      %18 = sbr.rel (0) target = $region5
    $region4: #{tpu_custom_call.1} parent=1 // pred_region
      _
    $region5: #{tpu_custom_call.1} parent=1 // pred_fallthru
      _
    // Predicated region
    $region6: #{tpu_custom_call.1} parent=1 // pred_check
      _
    $region7: #{tpu_custom_call.1} parent=1 // pred_check_branch
      %20 = sbr.rel (0) target = $region9
    $region8: #{tpu_custom_call.1} parent=1 // pred_region
      _
    $region9: #{tpu_custom_call.1} parent=1 // pred_fallthru
      _
    // Predicated region
    $region10: #{tpu_custom_call.1} parent=1 // pred_check
      _
    $region11: #{tpu_custom_call.1} parent=1 // pred_check_branch
      %22 = sbr.rel (0) target = $region13
    $region12: #{tpu_custom_call.1} parent=1 // pred_region
      _
    $region13: #{tpu_custom_call.1} parent=1 // pred_fallthru
      _
    // Predicated region
    $region14: #{tpu_custom_call.1} parent=1 // pred_check
      _
    $region15: #{tpu_custom_call.1} parent=1 // pred_check_branch
      %24 = sbr.rel (0) target = $region17
    $region16: #{tpu_custom_call.1} parent=1 // pred_region
      _
    $region17: #{tpu_custom_call.1} parent=1 // pred_fallthru
      _
    // Predicated region
    $region18: #{tpu_custom_call.1} parent=1 // pred_check
      _
    $region19: #{tpu_custom_call.1} parent=1 // pred_check_branch
      %26 = sbr.rel (0) target = $region21
    $region20: #{tpu_custom_call.1} parent=1 // pred_region
      _
    $region21: #{tpu_custom_call.1} parent=1 // pred_fallthru
      _
    // Predicated region
    $region22: #{tpu_custom_call.1} parent=1 // pred_check
      _
    $region23: #{tpu_custom_call.1} parent=1 // pred_check_branch
      %28 = sbr.rel (0) target = $region25
    $region24: #{tpu_custom_call.1} parent=1 // pred_region
      _
    $region25: #{tpu_custom_call.1} parent=1 // pred_fallthru
      _
    // Predicated region
    $region26: #{tpu_custom_call.1} parent=1 // pred_check
      _
    $region27: #{tpu_custom_call.1} parent=1 // pred_check_branch
      %30 = sbr.rel (0) target = $region29
    $region28: #{tpu_custom_call.1} parent=1 // pred_region
      _
    $region29: #{tpu_custom_call.1} parent=1 // pred_fallthru
      _
    // Predicated region
    $region30: #{tpu_custom_call.1} parent=1 // pred_check
      _
    $region31: #{tpu_custom_call.1} parent=1 // pred_check_branch
      %32 = sbr.rel (0) target = $region33
    $region32: #{tpu_custom_call.1} parent=1 // pred_region
      _
    $region33: #{tpu_custom_call.1} parent=1 // pred_fallthru
      _
    %v33 = vld [vmem:[%s0] sm:$0xff]
    %v34 = vld [vmem:[%s0 + $0x8] sm:$0xff]
    %v35 = vld [vmem:[%s1] sm:$0xff]
    %v36 = vld [vmem:[%s1 + $0x8] sm:$0xff]
    %v37 = vld [vmem:[%s1 + $0x10] sm:$0xff]
    %v38 = vld [vmem:[%s1 + $0x18] sm:$0xff]
    %v39 = vld [vmem:[%s2] sm:$0xff]
    %v40 = vld [vmem:[%s2 + $0x8] sm:$0xff]
    %v41 = vld [vmem:[%s2 + $0x10] sm:$0xff]
    %v42 = vld [vmem:[%s2 + $0x18] sm:$0xff]
    %v43 = vld [vmem:[%s3] sm:$0xff]
    %v44 = vld [vmem:[%s3 + $0x8] sm:$0xff]
    %v45 = vld [vmem:[%s3 + $0x10] sm:$0xff]
    %v46 = vld [vmem:[%s3 + $0x18] sm:$0xff]
    %v47 = vld [vmem:[%s4] sm:$0xff]
    %v48 = vld [vmem:[%s4 + $0x8] sm:$0xff]
    %v49 = vld [vmem:[%s4 + $0x10] sm:$0xff]
    %v50 = vld [vmem:[%s4 + $0x18] sm:$0xff]
    %v51 = vld [vmem:[%s5] sm:$0xff]
    %v52 = vld [vmem:[%s6] sm:$0xff]
    %54 = vset.pattern.permute.xlu0 0
    %55 = vperm.xlu0 %54, %v39
    %v56 = vpop.permute.xlu0 %55
    %59 = vset.pattern.permute.xlu0 0
    %60 = vperm.xlu0 %59, %v40
    %v61 = vpop.permute.xlu0 %60
    %64 = vset.pattern.permute.xlu0 0
    %65 = vperm.xlu0 %64, %v41
    %v66 = vpop.permute.xlu0 %65
    %69 = vset.pattern.permute.xlu0 0
    %70 = vperm.xlu0 %69, %v42
    %v71 = vpop.permute.xlu0 %70
    %vm73 = vcmask 130048
    %v75 = vsel %vm73, %v35, 0
    %v78 = vsel %vm73, %v36, 0
    %v81 = vsel %vm73, %v37, 0
    %v84 = vsel %vm73, %v38, 0
    %86 = vmatprep.subr.mxu0 0.0
    %87 = vmatpush1.msra.mxu0 %v33
    %88 = vmatprep.subr.mxu0 0.0
    %89 = vmatpush1.msra.mxu0 %v34
    %90 = vmatprep.subr.mxu0 0.0
    %91 = vmatpush1.msra.mxu0 0.0
    %92 = vmatprep.subr.mxu0 0.0
    %93 = vmatpush1.msra.mxu0 0.0
    %94 = vmatprep.subr.mxu0 0.0
    %95 = vmatpush1.msra.mxu0 0.0
    %96 = vmatprep.subr.mxu0 0.0
    %97 = vmatpush1.msra.mxu0 0.0
    %98 = vmatprep.subr.mxu0 0.0
    %99 = vmatpush1.msra.mxu0 0.0
    %100 = vmatprep.subr.mxu0 0.0
    %101 = vmatpush1.msra.mxu0 0.0
    %102 = vmatprep.subr.mxu0 0.0
    %103 = vmatpush1.msra.mxu0 0.0
    %104 = vmatprep.subr.mxu0 0.0
    %105 = vmatpush1.msra.mxu0 0.0
    %106 = vmatprep.subr.mxu0 0.0
    %107 = vmatpush1.msra.mxu0 0.0
    %108 = vmatprep.subr.mxu0 0.0
    %109 = vmatpush1.msra.mxu0 0.0
    %110 = vmatprep.subr.mxu0 0.0
    %111 = vmatpush1.msra.mxu0 0.0
    %112 = vmatprep.subr.mxu0 0.0
    %113 = vmatpush1.msra.mxu0 0.0
    %114 = vmatprep.subr.mxu0 0.0
    %115 = vmatpush1.msra.mxu0 0.0
    %116 = vmatprep.subr.mxu0 0.0
    %117 = vmatpush1.msra.mxu0 0.0
    %118 = vmatprep.subr.mxu0 0.0
    %119 = vmatpush1.msra.mxu0 0.0
    %120 = vmatprep.subr.mxu0 0.0
    %121 = vmatpush1.msra.mxu0 0.0
    %122 = vmatprep.subr.mxu0 0.0
    %123 = vmatpush1.msra.mxu0 0.0
    %124 = vmatprep.subr.mxu0 0.0
    %125 = vmatpush1.msra.mxu0 0.0
    %126 = vmatprep.subr.mxu0 0.0
    %127 = vmatpush1.msra.mxu0 0.0
    %128 = vmatprep.subr.mxu0 0.0
    %129 = vmatpush1.msra.mxu0 0.0
    %130 = vmatprep.subr.mxu0 0.0
    %131 = vmatpush1.msra.mxu0 0.0
    %132 = vmatprep.subr.mxu0 0.0
    %133 = vmatpush1.msra.mxu0 0.0
    %134 = vmatprep.subr.mxu0 0.0
    %135 = vmatpush1.msra.mxu0 0.0
    %136 = vmatprep.subr.mxu0 0.0
    %137 = vmatpush1.msra.mxu0 0.0
    %138 = vmatprep.subr.mxu0 0.0
    %139 = vmatpush1.msra.mxu0 0.0
    %140 = vmatprep.subr.mxu0 0.0
    %141 = vmatpush1.msra.mxu0 0.0
    %142 = vmatprep.subr.mxu0 0.0
    %143 = vmatpush1.msra.mxu0 0.0
    %144 = vmatprep.subr.mxu0 0.0
    %145 = vmatpush1.msra.mxu0 0.0
    %146 = vmatprep.subr.mxu0 0.0
    %147 = vmatpush1.msra.mxu0 0.0
    %148 = vmatprep.subr.mxu0 0.0
    %149 = vmatpush1.msra.mxu0 0.0
    %150 = vmatprep.mubr.f32.mxu0 0.0
    %151 = vmatmul.mubr.f32.gmra.mrb[0].mxu0 %v75
    %v152 = vpop.f32.mrb[0].mxu0
    %v153 = vadd.f32 %v56, %v152
    %v154 = vpop.f32.mrb[0].mxu0
    %155 = vmatprep.mubr.f32.mxu0 0.0
    %156 = vmatmul.mubr.f32.gmra.mrb[0].mxu0 %v78
    %v157 = vpop.f32.mrb[0].mxu0
    %v158 = vadd.f32 %v61, %v157
    %v159 = vpop.f32.mrb[0].mxu0
    %160 = vmatprep.mubr.f32.mxu0 0.0
    %161 = vmatmul.mubr.f32.gmra.mrb[0].mxu0 %v81
    %v162 = vpop.f32.mrb[0].mxu0
    %v163 = vadd.f32 %v66, %v162
    %v164 = vpop.f32.mrb[0].mxu0
    %165 = vmatprep.mubr.f32.mxu0 0.0
    %166 = vmatmul.mubr.f32.gmra.mrb[0].mxu0 %v84
    %v167 = vpop.f32.mrb[0].mxu0
    %v168 = vadd.f32 %v71, %v167
    %v169 = vpop.f32.mrb[0].mxu0
    %170 = vdwg.mxu0
    %v171 = vtanh.pop %v153
    %v172 = vtanh.pop %v158
    %v173 = vtanh.pop %v163
    %v174 = vtanh.pop %v168
    %176 = vset.pattern.permute.xlu0 0
    %177 = vperm.xlu0 %176, %v47
    %v178 = vpop.permute.xlu0 %177
    %181 = vset.pattern.permute.xlu0 0
    %182 = vperm.xlu0 %181, %v48
    %v183 = vpop.permute.xlu0 %182
    %186 = vset.pattern.permute.xlu0 0
    %187 = vperm.xlu0 %186, %v49
    %v188 = vpop.permute.xlu0 %187
    %191 = vset.pattern.permute.xlu0 0
    %192 = vperm.xlu0 %191, %v50
    %v193 = vpop.permute.xlu0 %192
    %vm195 = vcmask 261120
    %v197 = vsel %vm195, %v43, 0
    %v200 = vsel %vm195, %v44, 0
    %v203 = vsel %vm195, %v45, 0
    %v206 = vsel %vm195, %v46, 0
    %208 = vmatprep.subr.mxu0 0.0
    %209 = vmatpush1.msra.mxu0 %v171
    %210 = vmatprep.subr.mxu0 0.0
    %211 = vmatpush1.msra.mxu0 %v172
    %212 = vmatprep.subr.mxu0 0.0
    %213 = vmatpush1.msra.mxu0 %v173
    %214 = vmatprep.subr.mxu0 0.0
    %215 = vmatpush1.msra.mxu0 %v174
    %216 = vmatprep.subr.mxu0 0.0
    %217 = vmatpush1.msra.mxu0 0.0
    %218 = vmatprep.subr.mxu0 0.0
    %219 = vmatpush1.msra.mxu0 0.0
    %220 = vmatprep.subr.mxu0 0.0
    %221 = vmatpush1.msra.mxu0 0.0
    %222 = vmatprep.subr.mxu0 0.0
    %223 = vmatpush1.msra.mxu0 0.0
    %224 = vmatprep.subr.mxu0 0.0
    %225 = vmatpush1.msra.mxu0 0.0
    %226 = vmatprep.subr.mxu0 0.0
    %227 = vmatpush1.msra.mxu0 0.0
    %228 = vmatprep.subr.mxu0 0.0
    %229 = vmatpush1.msra.mxu0 0.0
    %230 = vmatprep.subr.mxu0 0.0
    %231 = vmatpush1.msra.mxu0 0.0
    %232 = vmatprep.subr.mxu0 0.0
    %233 = vmatpush1.msra.mxu0 0.0
    %234 = vmatprep.subr.mxu0 0.0
    %235 = vmatpush1.msra.mxu0 0.0
    %236 = vmatprep.subr.mxu0 0.0
    %237 = vmatpush1.msra.mxu0 0.0
    %238 = vmatprep.subr.mxu0 0.0
    %239 = vmatpush1.msra.mxu0 0.0
    %240 = vmatprep.subr.mxu0 0.0
    %241 = vmatpush1.msra.mxu0 0.0
    %242 = vmatprep.subr.mxu0 0.0
    %243 = vmatpush1.msra.mxu0 0.0
    %244 = vmatprep.subr.mxu0 0.0
    %245 = vmatpush1.msra.mxu0 0.0
    %246 = vmatprep.subr.mxu0 0.0
    %247 = vmatpush1.msra.mxu0 0.0
    %248 = vmatprep.subr.mxu0 0.0
    %249 = vmatpush1.msra.mxu0 0.0
    %250 = vmatprep.subr.mxu0 0.0
    %251 = vmatpush1.msra.mxu0 0.0
    %252 = vmatprep.subr.mxu0 0.0
    %253 = vmatpush1.msra.mxu0 0.0
    %254 = vmatprep.subr.mxu0 0.0
    %255 = vmatpush1.msra.mxu0 0.0
    %256 = vmatprep.subr.mxu0 0.0
    %257 = vmatpush1.msra.mxu0 0.0
    %258 = vmatprep.subr.mxu0 0.0
    %259 = vmatpush1.msra.mxu0 0.0
    %260 = vmatprep.subr.mxu0 0.0
    %261 = vmatpush1.msra.mxu0 0.0
    %262 = vmatprep.subr.mxu0 0.0
    %263 = vmatpush1.msra.mxu0 0.0
    %264 = vmatprep.subr.mxu0 0.0
    %265 = vmatpush1.msra.mxu0 0.0
    %266 = vmatprep.subr.mxu0 0.0
    %267 = vmatpush1.msra.mxu0 0.0
    %268 = vmatprep.subr.mxu0 0.0
    %269 = vmatpush1.msra.mxu0 0.0
    %270 = vmatprep.subr.mxu0 0.0
    %271 = vmatpush1.msra.mxu0 0.0
    %272 = vmatprep.mubr.f32.mxu0 0.0
    %273 = vmatmul.mubr.f32.gmra.mrb[0].mxu0 %v197
    %v274 = vpop.f32.mrb[0].mxu0
    %v275 = vadd.f32 %v178, %v274
    %v276 = vpop.f32.mrb[0].mxu0
    %277 = vmatprep.mubr.f32.mxu0 0.0
    %278 = vmatmul.mubr.f32.gmra.mrb[0].mxu0 %v200
    %v279 = vpop.f32.mrb[0].mxu0
    %v280 = vadd.f32 %v183, %v279
    %v281 = vpop.f32.mrb[0].mxu0
    %282 = vmatprep.mubr.f32.mxu0 0.0
    %283 = vmatmul.mubr.f32.gmra.mrb[0].mxu0 %v203
    %v284 = vpop.f32.mrb[0].mxu0
    %v285 = vadd.f32 %v188, %v284
    %v286 = vpop.f32.mrb[0].mxu0
    %287 = vmatprep.mubr.f32.mxu0 0.0
    %288 = vmatmul.mubr.f32.gmra.mrb[0].mxu0 %v206
    %v289 = vpop.f32.mrb[0].mxu0
    %v290 = vadd.f32 %v193, %v289
    %v291 = vpop.f32.mrb[0].mxu0
    %292 = vdwg.mxu0
    %v293 = vtanh.pop %v275
    %v294 = vtanh.pop %v280
    %v295 = vtanh.pop %v285
    %v296 = vtanh.pop %v290
    %298 = vset.pattern.permute.xlu0 0
    %299 = vperm.xlu0 %298, %v52
    %v300 = vpop.permute.xlu0 %299
    %v303 = vsel %vm195, %v51, 0
    %305 = vmatprep.subr.mxu0 0.0
    %306 = vmatpush1.msra.mxu0 %v293
    %307 = vmatprep.subr.mxu0 0.0
    %308 = vmatpush1.msra.mxu0 %v294
    %309 = vmatprep.subr.mxu0 0.0
    %310 = vmatpush1.msra.mxu0 %v295
    %311 = vmatprep.subr.mxu0 0.0
    %312 = vmatpush1.msra.mxu0 %v296
    %313 = vmatprep.subr.mxu0 0.0
    %314 = vmatpush1.msra.mxu0 0.0
    %315 = vmatprep.subr.mxu0 0.0
    %316 = vmatpush1.msra.mxu0 0.0
    %317 = vmatprep.subr.mxu0 0.0
    %318 = vmatpush1.msra.mxu0 0.0
    %319 = vmatprep.subr.mxu0 0.0
    %320 = vmatpush1.msra.mxu0 0.0
    %321 = vmatprep.subr.mxu0 0.0
    %322 = vmatpush1.msra.mxu0 0.0
    %323 = vmatprep.subr.mxu0 0.0
    %324 = vmatpush1.msra.mxu0 0.0
    %325 = vmatprep.subr.mxu0 0.0
    %326 = vmatpush1.msra.mxu0 0.0
    %327 = vmatprep.subr.mxu0 0.0
    %328 = vmatpush1.msra.mxu0 0.0
    %329 = vmatprep.subr.mxu0 0.0
    %330 = vmatpush1.msra.mxu0 0.0
    %331 = vmatprep.subr.mxu0 0.0
    %332 = vmatpush1.msra.mxu0 0.0
    %333 = vmatprep.subr.mxu0 0.0
    %334 = vmatpush1.msra.mxu0 0.0
    %335 = vmatprep.subr.mxu0 0.0
    %336 = vmatpush1.msra.mxu0 0.0
    %337 = vmatprep.subr.mxu0 0.0
    %338 = vmatpush1.msra.mxu0 0.0
    %339 = vmatprep.subr.mxu0 0.0
    %340 = vmatpush1.msra.mxu0 0.0
    %341 = vmatprep.subr.mxu0 0.0
    %342 = vmatpush1.msra.mxu0 0.0
    %343 = vmatprep.subr.mxu0 0.0
    %344 = vmatpush1.msra.mxu0 0.0
    %345 = vmatprep.subr.mxu0 0.0
    %346 = vmatpush1.msra.mxu0 0.0
    %347 = vmatprep.subr.mxu0 0.0
    %348 = vmatpush1.msra.mxu0 0.0
    %349 = vmatprep.subr.mxu0 0.0
    %350 = vmatpush1.msra.mxu0 0.0
    %351 = vmatprep.subr.mxu0 0.0
    %352 = vmatpush1.msra.mxu0 0.0
    %353 = vmatprep.subr.mxu0 0.0
    %354 = vmatpush1.msra.mxu0 0.0
    %355 = vmatprep.subr.mxu0 0.0
    %356 = vmatpush1.msra.mxu0 0.0
    %357 = vmatprep.subr.mxu0 0.0
    %358 = vmatpush1.msra.mxu0 0.0
    %359 = vmatprep.subr.mxu0 0.0
    %360 = vmatpush1.msra.mxu0 0.0
    %361 = vmatprep.subr.mxu0 0.0
    %362 = vmatpush1.msra.mxu0 0.0
    %363 = vmatprep.subr.mxu0 0.0
    %364 = vmatpush1.msra.mxu0 0.0
    %365 = vmatprep.subr.mxu0 0.0
    %366 = vmatpush1.msra.mxu0 0.0
    %367 = vmatprep.subr.mxu0 0.0
    %368 = vmatpush1.msra.mxu0 0.0
    %369 = vmatprep.mubr.f32.mxu0 0.0
    %370 = vmatmul.mubr.f32.gmra.mrb[0].mxu0 %v303
    %v371 = vpop.f32.mrb[0].mxu0
    %v372 = vadd.f32 %v300, %v371
    %v373 = vpop.f32.mrb[0].mxu0
    %374 = vdwg.mxu0
    %375 = vst [vmem:[#allocation2] sm:$0xff] %v372
    %v376 = vrot.slane %v372, 4
    %v377 = vmax.f32 %v372, %v376
    %v378 = vrot.slane %v377, 2
    %v379 = vmax.f32 %v377, %v378
    %v380 = vrot.slane %v379, 1
    %v381 = vmax.f32 %v379, %v380
    %v382 = vsub.f32 %v372, %v381
    %v383 = vmul.f32 %v382, 1.442695
    %v384 = vpow.pop %v383
    %v385 = vrot.slane %v384, 4
    %v386 = vadd.f32 %v384, %v385
    %v387 = vrot.slane %v386, 2
    %v388 = vadd.f32 %v386, %v387
    %v389 = vrot.slane %v388, 1
    %v390 = vadd.f32 %v388, %v389
    %v391 = vlog2.pop %v390
    %v392 = vmul.f32 %v391, 0.6931472
    %v393 = vadd.f32 %v381, %v392
    %v394 = vld [vmem:[%s7] sm:$0x1]
    %vm395 = vcmp.gt.s32.totalorder %v394, 0
    %v396 = vsel %vm395, %v394, 0
    %vm397 = vcmp.lt.s32.totalorder %v396, 7
    %v398 = vsel %vm397, %v396, 7
    %v399 = vlaneseq
    %v400 = vshrl.u32 %v399, 7
    %v401 = vlaneseq
    %v402 = vshrl.u32 %v401, 7
    %v403 = vsub.s32 0, %v402
    %v404 = vrot.slane %v398, %v403
    %vm405 = vcmp.eq.s32.totalorder %v400, %v404
    %v406 = vsel %vm405, %v372, 0.0
    %v407 = vrot.slane %v406, 4
    %v408 = vadd.f32 %v406, %v407
    %v409 = vrot.slane %v408, 2
    %v410 = vadd.f32 %v408, %v409
    %v411 = vrot.slane %v410, 1
    %v412 = vadd.f32 %v410, %v411
    %v413 = vsub.f32 %v412, %v393
    %414 = vst [vmem:[#allocation4] sm:$0x1] %v413
    // Predicated region
    $region34: #{tpu_custom_call.1} parent=1 // pred_check
      _
    $region35: #{tpu_custom_call.1} parent=1 // pred_check_branch
      %416 = sbr.rel (0) target = $region37
    $region36: #{tpu_custom_call.1} parent=1 // pred_region
      %s418 = ssub.s32 128, 128
      %419 = vsyncadd [#allocation3], %s418
      %s421 = sshll.u32 [#allocation2], 4
      %s422 = int_to_ptr.vmem [resolvable:$true] %s421
      %424 = dma.vmem_to_hbm [thread:$0]  %s422, 128, %s8, [#allocation3]
    $region37: #{tpu_custom_call.1} parent=1 // pred_fallthru
      _
    // Predicated region
    $region38: #{tpu_custom_call.1} parent=1 // pred_check
      _
    $region39: #{tpu_custom_call.1} parent=1 // pred_check_branch
      %426 = sbr.rel (0) target = $region41
    $region40: #{tpu_custom_call.1} parent=1 // pred_region
      %s428 = ssub.s32 16, 16
      %429 = vsyncadd [#allocation5], %s428
      %s431 = sshll.u32 [#allocation4], 4
      %s432 = int_to_ptr.vmem [resolvable:$true] %s431
      %434 = dma.vmem_to_hbm [thread:$0]  %s432, 16, %s9, [#allocation5]
    $region41: #{tpu_custom_call.1} parent=1 // pred_fallthru
      _
    // Predicated region
    $region42: #{tpu_custom_call.1} parent=1 // pred_check
      _
    $region43: #{tpu_custom_call.1} parent=1 // pred_check_branch
      %436 = sbr.rel (0) target = $region45
    $region44: #{tpu_custom_call.1} parent=1 // pred_region
      %437 = dma.done [#allocation3], 128
    $region45: #{tpu_custom_call.1} parent=1 // pred_fallthru
      _
    // Predicated region
    $region46: #{tpu_custom_call.1} parent=1 // pred_check
      _
    $region47: #{tpu_custom_call.1} parent=1 // pred_check_branch
      %439 = sbr.rel (0) target = $region49
    $region48: #{tpu_custom_call.1} parent=1 // pred_region
      %440 = dma.done [#allocation5], 16
    $region49: #{tpu_custom_call.1} parent=1 // pred_fallthru
      _
    %441 = vsyncpa [#allocation3], 1
    %442 = vsyncpa [#allocation5], 1

</llo_original>
